<compile_context>
chip_gen: v7x
topology: tpu7x:2x2x1
jax: 0.10.0
libtpu: 0.0.40
codegen_flags: <defaults>
</compile_context>

<pallas_src>
import functools

import jax
import jax.numpy as jnp
from jax.experimental import pallas as pl
from jax.experimental.pallas import tpu as pltpu


def _cdiv(a, b):
    return (a + b - 1) // b


def _round_up(x, m):
    return _cdiv(x, m) * m


# ---------------------------------------------------------------------------
# Kernels
# ---------------------------------------------------------------------------

def _afms_fused_kernel(x_ref, wt_ref, b_ref, alpha_ref, o_ref, *, inv_t):
    # x_ref: (bB, C, T); wt_ref: (C, C) = W^T; b_ref / alpha_ref: (1, C).
    x = x_ref[...]                                                   # input dtype
    m = jnp.sum(x, axis=2, dtype=jnp.float32) * inv_t                # (bB, C) f32 mean
    z = jnp.dot(m, wt_ref[...], preferred_element_type=jnp.float32) + b_ref[...]
    gate = jax.nn.sigmoid(z).astype(x.dtype)                         # (bB, C)
    alpha = alpha_ref[...].astype(x.dtype)                           # (1, C)
    o_ref[...] = ((x + alpha[:, :, None]) * gate[:, :, None]).astype(o_ref.dtype)


def _afms_gate_kernel(x_ref, wt_ref, b_ref, gate_ref, acc_ref, *,
                      inv_t, t_total, t_tile, ragged):
    # Pass 1 of the T-tiled path: accumulate the per-row sum over T tiles and
    # compute gate = sigmoid(mean @ W^T + b) on the last tile.  The ragged last
    # tile (T not a multiple of t_tile) is masked with an iota; the DMA only
    # fills the valid columns, the rest of the buffer is garbage.
    t = pl.program_id(1)

    @pl.when(t == 0)
    def _():
        acc_ref[...] = jnp.zeros_like(acc_ref)

    x = x_ref[...]                                                   # (1, C, tT)
    if ragged:
        col = t * t_tile + jax.lax.broadcasted_iota(jnp.int32, x.shape, 2)
        x = jnp.where(col < t_total, x, jnp.zeros_like(x))
    acc_ref[...] += jnp.sum(x, axis=2, dtype=jnp.float32)            # (1, C)

    @pl.when(t == pl.num_programs(1) - 1)
    def _():
        m = acc_ref[...] * inv_t
        z = jnp.dot(m, wt_ref[...], preferred_element_type=jnp.float32) + b_ref[...]
        gate_ref[0] = jax.nn.sigmoid(z)                              # (1, C) -> (1,1,C)


def _afms_scale_kernel(x_ref, gate_ref, alpha_ref, o_ref):
    # Pass 2 of the T-tiled path: out = (x + alpha) * gate, elementwise in the
    # input dtype.  Garbage in a ragged last tile only lands in OOB columns,
    # whose stores are dropped by the pipeline.
    x = x_ref[...]                                                   # (1, C, tT)
    gate = gate_ref[0].astype(x.dtype)                               # (1, C)
    alpha = alpha_ref[...].astype(x.dtype)                           # (1, C)
    o_ref[...] = ((x + alpha[:, :, None]) * gate[:, :, None]).astype(o_ref.dtype)


# ---------------------------------------------------------------------------
# Wrappers
# ---------------------------------------------------------------------------

def _vmem_capacity_bytes():
    try:
        cap = getattr(pltpu.get_tpu_info(), "vmem_capacity_bytes", None)
        if cap:
            return int(cap)
    except Exception:
        pass
    return 64 * 1024 * 1024  # conservative (v7x-sized) fallback


def _single_pass(x, wt, b2, alpha2, bB, nB, inv_t, vmem_limit, interpret):
    B, C, T = x.shape
    itemsize = jnp.dtype(x.dtype).itemsize
    return pl.pallas_call(
        functools.partial(_afms_fused_kernel, inv_t=inv_t),
        out_shape=jax.ShapeDtypeStruct((B, C, T), x.dtype),
        grid_spec=pltpu.PrefetchScalarGridSpec(
            num_scalar_prefetch=0,
            grid=(nB,),
            in_specs=[
                pl.BlockSpec((bB, C, T), lambda i: (i, 0, 0)),   # x
                pl.BlockSpec((C, C), lambda i: (0, 0)),          # W^T (resident)
                pl.BlockSpec((1, C), lambda i: (0, 0)),          # bias
                pl.BlockSpec((1, C), lambda i: (0, 0)),          # alpha
            ],
            out_specs=pl.BlockSpec((bB, C, T), lambda i: (i, 0, 0)),
        ),
        compiler_params=pltpu.CompilerParams(
            dimension_semantics=("parallel",),
            vmem_limit_bytes=vmem_limit,
        ),
        cost_estimate=pl.CostEstimate(
            flops=int(2 * B * C * C + 3 * B * C * T),
            transcendentals=int(B * C),
            bytes_accessed=int(2 * B * C * T * itemsize),
        ),
        interpret=interpret,
    )(x, wt, b2, alpha2)


def _two_pass(x, wt, b2, alpha2, tT, nT, inv_t, vmem_limit, interpret):
    B, C, T = x.shape
    itemsize = jnp.dtype(x.dtype).itemsize
    ragged = (T % tT) != 0

    # Pass 1: per-batch gate (tiny (B, 1, C) f32 output).
    gate = pl.pallas_call(
        functools.partial(_afms_gate_kernel, inv_t=inv_t, t_total=T,
                          t_tile=tT, ragged=ragged),
        out_shape=jax.ShapeDtypeStruct((B, 1, C), jnp.float32),
        grid_spec=pltpu.PrefetchScalarGridSpec(
            num_scalar_prefetch=0,
            grid=(B, nT),
            in_specs=[
                pl.BlockSpec((1, C, tT), lambda i, t: (i, 0, t)),
                pl.BlockSpec((C, C), lambda i, t: (0, 0)),
                pl.BlockSpec((1, C), lambda i, t: (0, 0)),
            ],
            out_specs=pl.BlockSpec((1, 1, C), lambda i, t: (i, 0, 0)),
            scratch_shapes=[pltpu.VMEM((1, C), jnp.float32)],
        ),
        compiler_params=pltpu.CompilerParams(
            dimension_semantics=("parallel", "arbitrary"),
            vmem_limit_bytes=vmem_limit,
        ),
        cost_estimate=pl.CostEstimate(
            flops=int(2 * B * C * C + B * C * T),
            transcendentals=int(B * C),
            bytes_accessed=int(B * C * T * itemsize),
        ),
        interpret=interpret,
    )(x, wt, b2)

    # Pass 2: T-tiled elementwise scaling with the tiny gate resident.
    out = pl.pallas_call(
        _afms_scale_kernel,
        out_shape=jax.ShapeDtypeStruct((B, C, T), x.dtype),
        grid_spec=pltpu.PrefetchScalarGridSpec(
            num_scalar_prefetch=0,
            grid=(B, nT),
            in_specs=[
                pl.BlockSpec((1, C, tT), lambda i, t: (i, 0, t)),
                pl.BlockSpec((1, 1, C), lambda i, t: (i, 0, 0)),
                pl.BlockSpec((1, C), lambda i, t: (0, 0)),
            ],
            out_specs=pl.BlockSpec((1, C, tT), lambda i, t: (i, 0, t)),
        ),
        compiler_params=pltpu.CompilerParams(
            dimension_semantics=("parallel", "parallel"),
            vmem_limit_bytes=vmem_limit,
        ),
        cost_estimate=pl.CostEstimate(
            flops=int(2 * B * C * T),
            transcendentals=0,
            bytes_accessed=int(2 * B * C * T * itemsize),
        ),
        interpret=interpret,
    )(x, gate, alpha2)
    return out


def afms(x, w, b, alpha, *, max_block_bytes=None, interpret=False):
    """AFMS forward. x: (B, C, T); w: (C, C); b: (C,); alpha: (C, 1) or (C,)."""
    B, C, T = x.shape
    itemsize = jnp.dtype(x.dtype).itemsize
    sublane = 8 * max(1, 4 // itemsize)          # layout sublane multiple

    # Parameters stay in f32: mean accumulation, matmul and sigmoid are f32.
    wt = jnp.asarray(w, jnp.float32).T                   # gate = sig(m @ W^T + b)
    b2 = jnp.asarray(b, jnp.float32).reshape(1, C)
    alpha2 = jnp.asarray(alpha, jnp.float32).reshape(1, C)

    # inv_t is baked in: block shapes / grid already depend on T, so a distinct
    # T triggers a recompile regardless of whether inv_t were a runtime scalar.
    inv_t = 1.0 / T

    # Generation-aware VMEM budget (~96 MiB limit on 128-MiB parts, 48 MiB on v7x).
    vmem_cap = _vmem_capacity_bytes()
    vmem_limit = int(min(vmem_cap * 3 // 4, 100 * 1024 * 1024))
    wt_vmem = _round_up(C, 8) * _round_up(C, 128) * 4
    if max_block_bytes is None:
        # 2x(in)+2x(out) double-buffering + resident W^T + temporaries headroom.
        max_block_bytes = max(512 * 1024,
                              (vmem_limit - 2 * wt_vmem - 2 * 1024 * 1024) // 6)

    # VMEM footprint of one (C, T) slab after layout padding.
    slab_vmem = _round_up(C, sublane) * _round_up(T, 128) * itemsize

    if slab_vmem <= max_block_bytes:
        # Fused single pass over full (C, T) slabs, several batch rows per step
        # (reads x once, writes out once: 2x HBM traffic vs 3x for two-pass).
        bB = max(1, min(B, max_block_bytes // slab_vmem))
        if vmem_cap <= 64 * 1024 * 1024 and B >= 2:
            # Small-VMEM (v7x-style, 2 TensorCores): keep >= 2 parallel steps.
            bB = min(bB, _cdiv(B, 2))
        nB = _cdiv(B, bB)
        bB = _cdiv(B, nB)          # rebalance so a trailing partial block isn't tiny
        nB = _cdiv(B, bB)
        return _single_pass(x, wt, b2, alpha2, bB, nB, inv_t, vmem_limit, interpret)

    # Two passes, T-tiled (gate then scale) for very long slabs.  No padding:
    # nT = cdiv(T, tT) and the ragged last tile is masked / dropped in-kernel.
    row_vmem = _round_up(C, sublane) * itemsize
    tT = max(128, (max_block_bytes // row_vmem) // 128 * 128)
    if tT >= T:
        tT = T                    # single full-extent T tile
    nT = _cdiv(T, tT)
    return _two_pass(x, wt, b2, alpha2, tT, nT, inv_t, vmem_limit, interpret)


def afms_ref(x, w, b, alpha):
    # Pure-JAX reference mirroring the PyTorch module exactly.
    y = jnp.mean(x, axis=-1)                                  # (B, C)
    y = jax.nn.sigmoid(y @ w.T + b)                           # (B, C)
    return (x + alpha.reshape(1, -1, 1)) * y[:, :, None]


if __name__ == "__main__":
    def make_inputs(key, B, C, T):
        kx, kw, kb = jax.random.split(key, 3)
        x = jax.random.normal(kx, (B, C, T), dtype=jnp.float32)
        alpha = jnp.ones((C, 1), dtype=jnp.float32)           # AFMS init: ones
        bound = 1.0 / (C ** 0.5)
        w = jax.random.uniform(kw, (C, C), jnp.float32, -bound, bound)
        b = jax.random.uniform(kb, (C,), jnp.float32, -bound, bound)
        return x, w, b, alpha

    # 1) Small fused single-pass path (full-slab blocks, no padding anywhere).
    x, w, b, alpha = make_inputs(jax.random.PRNGKey(0), B=2, C=16, T=32)
    out = jax.block_until_ready(afms(x, w, b, alpha))
    assert out.shape == x.shape
    assert jnp.allclose(out, afms_ref(x, w, b, alpha), atol=1e-5, rtol=1e-5), \
        "fused path mismatch"

    # 2) Unaligned C / T (blocks cover the full dims, so no (8,128) padding).
    x, w, b, alpha = make_inputs(jax.random.PRNGKey(1), B=3, C=24, T=100)
    out = jax.block_until_ready(afms(x, w, b, alpha))
    assert jnp.allclose(out, afms_ref(x, w, b, alpha), atol=1e-5, rtol=1e-5), \
        "unaligned fused path mismatch"

    # 3) Single-pass with a partial trailing batch block (grid = cdiv(B, bB)).
    x, w, b, alpha = make_inputs(jax.random.PRNGKey(2), B=3, C=16, T=300)
    out = jax.block_until_ready(afms(x, w, b, alpha, max_block_bytes=49152))
    assert jnp.allclose(out, afms_ref(x, w, b, alpha), atol=1e-5, rtol=1e-5), \
        "partial-batch fused path mismatch"

    # 4) Two-pass T-tiled path with a ragged (masked) last T tile, forced via a
    #    tiny block budget so it is exercised at small shapes.
    x, w, b, alpha = make_inputs(jax.random.PRNGKey(3), B=2, C=16, T=300)
    out = jax.block_until_ready(afms(x, w, b, alpha, max_block_bytes=8192))
    assert jnp.allclose(out, afms_ref(x, w, b, alpha), atol=1e-5, rtol=1e-5), \
        "two-pass path mismatch"

    print("KERNEL_OK")
</pallas_src>

<mosaic_0001>
module attributes {stable_mosaic.version = 11 : i64} {
  func.func @_afms_fused_kernel(%arg0: i32, %arg1: memref<1x16x32xf32, #tpu.memory_space<vmem>>, %arg2: memref<16x16xf32, #tpu.memory_space<vmem>>, %arg3: memref<1x16xf32, #tpu.memory_space<vmem>>, %arg4: memref<1x16xf32, #tpu.memory_space<vmem>>, %arg5: memref<1x16x32xf32, #tpu.memory_space<vmem>>) attributes {dimension_semantics = [#tpu.dimension_semantics<parallel>], iteration_bounds = array<i64: 2>, scalar_prefetch = 0 : i64, scratch_operands = 0 : i64, tpu.core_type = #tpu.core_type<tc>, window_params = [{transform_indices = @transform_0, window_bounds = array<i64: 1, 16, 32>}, {pipeline_mode = #tpu.pipeline_mode<synchronous>, transform_indices = @transform_1, window_bounds = array<i64: 16, 16>}, {pipeline_mode = #tpu.pipeline_mode<synchronous>, transform_indices = @transform_2, window_bounds = array<i64: 1, 16>}, {pipeline_mode = #tpu.pipeline_mode<synchronous>, transform_indices = @transform_3, window_bounds = array<i64: 1, 16>}, {transform_indices = @transform_4, window_bounds = array<i64: 1, 16, 32>}]} {
    %c0 = arith.constant 0 : index
    %c0_0 = arith.constant 0 : index
    %c0_1 = arith.constant 0 : index
    %0 = vector.load %arg1[%c0, %c0_0, %c0_1] : memref<1x16x32xf32, #tpu.memory_space<vmem>>, vector<1x16x32xf32>
    %cst = arith.constant dense<0.000000e+00> : vector<1x16xf32>
    %1 = vector.multi_reduction <add>, %0, %cst [2] : vector<1x16x32xf32> to vector<1x16xf32>
    %cst_2 = arith.constant 3.125000e-02 : f32
    %2 = vector.broadcast %cst_2 : f32 to vector<1x16xf32>
    %3 = arith.mulf %1, %2 : vector<1x16xf32>
    %c0_3 = arith.constant 0 : index
    %c0_4 = arith.constant 0 : index
    %4 = vector.load %arg2[%c0_3, %c0_4] : memref<16x16xf32, #tpu.memory_space<vmem>>, vector<16x16xf32>
    %cst_5 = arith.constant dense<0.000000e+00> : vector<1x16xf32>
    %5 = tpu.matmul %3, %4, %cst_5 {dimension_numbers = #tpu.dot_dimension_numbers<[1], [0], [0], [1], [0, 0, 1, 1], [], []>} : vector<1x16xf32>, vector<16x16xf32>, vector<1x16xf32> -> vector<1x16xf32>
    %c0_6 = arith.constant 0 : index
    %c0_7 = arith.constant 0 : index
    %6 = vector.load %arg3[%c0_6, %c0_7] : memref<1x16xf32, #tpu.memory_space<vmem>>, vector<1x16xf32>
    %7 = arith.addf %5, %6 : vector<1x16xf32>
    %8 = arith.negf %7 : vector<1x16xf32>
    %9 = math.exp %8 : vector<1x16xf32>
    %cst_8 = arith.constant 1.000000e+00 : f32
    %10 = vector.broadcast %cst_8 : f32 to vector<1x16xf32>
    %11 = arith.addf %10, %9 : vector<1x16xf32>
    %12 = arith.divf %10, %11 : vector<1x16xf32>
    %c0_9 = arith.constant 0 : index
    %c0_10 = arith.constant 0 : index
    %13 = vector.load %arg4[%c0_9, %c0_10] : memref<1x16xf32, #tpu.memory_space<vmem>>, vector<1x16xf32>
    %14 = vector.shape_cast %13 : vector<1x16xf32> to vector<1x16x1xf32>
    %15 = vector.broadcast %14 : vector<1x16x1xf32> to vector<1x16x32xf32>
    %16 = arith.addf %0, %15 : vector<1x16x32xf32>
    %17 = vector.shape_cast %12 : vector<1x16xf32> to vector<1x16x1xf32>
    %18 = vector.broadcast %17 : vector<1x16x1xf32> to vector<1x16x32xf32>
    %19 = arith.mulf %16, %18 : vector<1x16x32xf32>
    %c0_11 = arith.constant 0 : index
    %c0_12 = arith.constant 0 : index
    %c0_13 = arith.constant 0 : index
    %20 = vector.load %arg5[%c0_11, %c0_12, %c0_13] : memref<1x16x32xf32, #tpu.memory_space<vmem>>, vector<1x16x32xf32>
    tpu.vector_store %arg5[%c0_11, %c0_12, %c0_13], %19 {strides = array<i32>} : memref<1x16x32xf32, #tpu.memory_space<vmem>>, vector<1x16x32xf32>,
    return
  }
  func.func @transform_0(%arg0: i32) -> (i32, i32, i32) {
    %c0_i32 = arith.constant 0 : i32
    %c0_i32_0 = arith.constant 0 : i32
    %c0_i32_1 = arith.constant 0 : i32
    return %arg0, %c0_i32, %c0_i32_0 : i32, i32, i32
  }
  func.func @transform_1(%arg0: i32) -> (i32, i32) {
    %c0_i32 = arith.constant 0 : i32
    %c0_i32_0 = arith.constant 0 : i32
    %c0_i32_1 = arith.constant 0 : i32
    return %c0_i32, %c0_i32_0 : i32, i32
  }
  func.func @transform_2(%arg0: i32) -> (i32, i32) {
    %c0_i32 = arith.constant 0 : i32
    %c0_i32_0 = arith.constant 0 : i32
    %c0_i32_1 = arith.constant 0 : i32
    return %c0_i32, %c0_i32_0 : i32, i32
  }
  func.func @transform_3(%arg0: i32) -> (i32, i32) {
    %c0_i32 = arith.constant 0 : i32
    %c0_i32_0 = arith.constant 0 : i32
    %c0_i32_1 = arith.constant 0 : i32
    return %c0_i32, %c0_i32_0 : i32, i32
  }
  func.func @transform_4(%arg0: i32) -> (i32, i32, i32) {
    %c0_i32 = arith.constant 0 : i32
    %c0_i32_0 = arith.constant 0 : i32
    %c0_i32_1 = arith.constant 0 : i32
    return %arg0, %c0_i32, %c0_i32_0 : i32, i32, i32
  }
}

</mosaic_0001>

<llo_original>
// kernel: tpu_custom_call.1
$region0: #{tpu_custom_call.1}
  #allocation0 [shape = 'u32[]', space=smem, size = 0x4, offset = 0x4, fixed_abs, tag = 'smem constant byte address 0x4 - core index']
  #allocation1 [shape = 'u32[144,128]{1,0:T(1,128)}', space=vmem, size = 0x12000, scoped, tag = 'internal scratch']
  %s0 = inlined_call_operand.hbm [shape: f32[2,16,32], index: 0, kind: input, shape index: {}]
  %s1 = inlined_call_operand.hbm [shape: f32[16,16], index: 1, kind: input, shape index: {}]
  %s2 = inlined_call_operand.vmem [shape: f32[1,16], index: 2, kind: input, shape index: {}]
  %s3 = inlined_call_operand.vmem [shape: f32[1,16], index: 3, kind: input, shape index: {}]
  %s4 = inlined_call_operand.hbm [shape: f32[2,16,32], index: 4, kind: output, shape index: {}]
  %s5 = sld [smem:[#allocation0]]
  $region57: #{tpu_custom_call.1} parent=0
    _
  %s7 = ssub.s32 1, %s5
  %s8 = scalar_select 0, %s7, %s5
  $region1: #{tpu_custom_call.1} parent=0
    #allocation2 [shape = 'u8[16384]{0}', space=vmem, size = 0x4000, scoped, tag = 'input window, operand 0']
    #allocation3 [shape = 's32[2]{0}', space=sflag, size = 0x8, scoped, tag = 'scoped memory for tpu_custom_call.1']
    #allocation4 [shape = 's32[2]{0}', space=sflag, size = 0x8, scoped, tag = 'scoped memory for tpu_custom_call.1']
    #allocation5 [shape = 'u8[8192]{0}', space=vmem, size = 0x2000, scoped, tag = 'input window, operand 1, single buffered']
    #allocation6 [shape = 's32[1]{0}', space=sflag, size = 0x4, scoped, tag = 'scoped memory for tpu_custom_call.1']
    #allocation7 [shape = 'u8[16384]{0}', space=vmem, size = 0x4000, scoped, tag = 'output window, operand 0']
    %9 = vsyncpa [#allocation3], 0
    %s10 = scalar_lea.sflag [#allocation3], 1
    %11 = vsyncpa %s10, 0
    %12 = vsyncpa [#allocation6], 0
    %13 = vsyncpa [#allocation4], 0
    %s14 = scalar_lea.sflag [#allocation4], 1
    %15 = vsyncpa %s14, 0
    loop: start=0, step=1, limit=4
    $region2: #{tpu_custom_call.1} parent=1 // loop_pre_header
      _
    $region3: #{tpu_custom_call.1} parent=1 // loop_header
      %s17 = sphi 0, %s21
      %p18 = scmp.ge.s32.totalorder %s17, 4
      %s27 = sphi 0, %s29
      %s30 = sphi 0, %s27
      %s31 = sphi 0, %s30
      %s47 = sphi 0, %s31
      %s51 = sphi 0, %s51
      %s53 = sphi 0, %s51
      %s54 = sphi 0, %s53
      %s68 = sphi 0, %s54
      %s72 = sphi 0, %s72
      %s74 = sphi 0, %s72
      %s75 = sphi 0, %s74
      %s89 = sphi 0, %s75
      %s93 = sphi 0, %s93
      %s95 = sphi 0, %s93
      %s96 = sphi 0, %s95
      %s110 = sphi 0, %s96
      %s116 = sphi 0, %s118
      %s119 = sphi 0, %s116
      %s120 = sphi 0, %s119
      %s136 = sphi 0, %s120
    $region4: #{tpu_custom_call.1} parent=1 // loop_header_branch
      %20 = sbr.rel (%p18) target = $region8
    $region5: #{tpu_custom_call.1} parent=1 // loop_body
      %s22 = ssub.s32 %s17, 1
      %s23 = ssub.s32 %s17, 2
      %s24 = sadd.s32 %s17, 1
      %s25 = ssub.s32 %s17, %s24
      %p26 = scmp.eq.s32.totalorder %s25, 0
      %s28 = sadd.s32 %s27, 1
      %s29 = scalar_select %p26, %s27, %s28
      %p32 = pneg %p26
      %p33 = scmp.eq.s32.totalorder %s17, 1
      %p34 = por %p32, %p33
      %p35 = scmp.ne.s32.totalorder %s27, %s30
      %p36 = scmp.eq.s32.totalorder %s17, 0
      %p37 = por %p35, %p36
      %p38 = scmp.ne.s32.totalorder %s27, %s30
      %p39 = scmp.eq.s32.totalorder %s22, 1
      %p40 = por %p38, %p39
      %p41 = scmp.ne.s32.totalorder %s30, %s31
      %p42 = scmp.eq.s32.totalorder %s22, 0
      %p43 = por %p41, %p42
      %p44 = scmp.ne.s32.totalorder %s30, %s31
      %p45 = scmp.eq.s32.totalorder %s23, 1
      %p46 = por %p44, %p45
      %p48 = scmp.ne.s32.totalorder %s31, %s47
      %p49 = scmp.eq.s32.totalorder %s23, 0
      %p50 = por %p48, %p49
      %s52 = sadd.s32 %s51, 1
      %p55 = scmp.eq.s32.totalorder %s17, 1
      %p56 = scmp.ne.s32.totalorder %s51, %s53
      %p57 = scmp.eq.s32.totalorder %s17, 0
      %p58 = por %p56, %p57
      %p59 = scmp.ne.s32.totalorder %s51, %s53
      %p60 = scmp.eq.s32.totalorder %s22, 1
      %p61 = por %p59, %p60
      %p62 = scmp.ne.s32.totalorder %s53, %s54
      %p63 = scmp.eq.s32.totalorder %s22, 0
      %p64 = por %p62, %p63
      %p65 = scmp.ne.s32.totalorder %s53, %s54
      %p66 = scmp.eq.s32.totalorder %s23, 1
      %p67 = por %p65, %p66
      %p69 = scmp.ne.s32.totalorder %s54, %s68
      %p70 = scmp.eq.s32.totalorder %s23, 0
      %p71 = por %p69, %p70
      %s73 = sadd.s32 %s72, 1
      %p76 = scmp.eq.s32.totalorder %s17, 1
      %p77 = scmp.ne.s32.totalorder %s72, %s74
      %p78 = scmp.eq.s32.totalorder %s17, 0
      %p79 = por %p77, %p78
      %p80 = scmp.ne.s32.totalorder %s72, %s74
      %p81 = scmp.eq.s32.totalorder %s22, 1
      %p82 = por %p80, %p81
      %p83 = scmp.ne.s32.totalorder %s74, %s75
      %p84 = scmp.eq.s32.totalorder %s22, 0
      %p85 = por %p83, %p84
      %p86 = scmp.ne.s32.totalorder %s74, %s75
      %p87 = scmp.eq.s32.totalorder %s23, 1
      %p88 = por %p86, %p87
      %p90 = scmp.ne.s32.totalorder %s75, %s89
      %p91 = scmp.eq.s32.totalorder %s23, 0
      %p92 = por %p90, %p91
      %s94 = sadd.s32 %s93, 1
      %p97 = scmp.eq.s32.totalorder %s17, 1
      %p98 = scmp.ne.s32.totalorder %s93, %s95
      %p99 = scmp.eq.s32.totalorder %s17, 0
      %p100 = por %p98, %p99
      %p101 = scmp.ne.s32.totalorder %s93, %s95
      %p102 = scmp.eq.s32.totalorder %s22, 1
      %p103 = por %p101, %p102
      %p104 = scmp.ne.s32.totalorder %s95, %s96
      %p105 = scmp.eq.s32.totalorder %s22, 0
      %p106 = por %p104, %p105
      %p107 = scmp.ne.s32.totalorder %s95, %s96
      %p108 = scmp.eq.s32.totalorder %s23, 1
      %p109 = por %p107, %p108
      %p111 = scmp.ne.s32.totalorder %s96, %s110
      %p112 = scmp.eq.s32.totalorder %s23, 0
      %p113 = por %p111, %p112
      %s114 = ssub.s32 %s17, %s24
      %p115 = scmp.eq.s32.totalorder %s114, 0
      %s117 = sadd.s32 %s116, 1
      %s118 = scalar_select %p115, %s116, %s117
      %p121 = pneg %p115
      %p122 = scmp.eq.s32.totalorder %s17, 1
      %p123 = por %p121, %p122
      %p124 = scmp.ne.s32.totalorder %s116, %s119
      %p125 = scmp.eq.s32.totalorder %s17, 0
      %p126 = por %p124, %p125
      %p127 = scmp.ne.s32.totalorder %s116, %s119
      %p128 = scmp.eq.s32.totalorder %s22, 1
      %p129 = por %p127, %p128
      %p130 = scmp.ne.s32.totalorder %s119, %s120
      %p131 = scmp.eq.s32.totalorder %s22, 0
      %p132 = por %p130, %p131
      %p133 = scmp.ne.s32.totalorder %s119, %s120
      %p134 = scmp.eq.s32.totalorder %s23, 1
      %p135 = por %p133, %p134
      %p137 = scmp.ne.s32.totalorder %s120, %s136
      %p138 = scmp.eq.s32.totalorder %s23, 0
      %p139 = por %p137, %p138
      %p140 = scmp.le.s32.totalorder 1, %s17
      %p141 = scmp.lt.s32.totalorder %s17, 3
      %p142 = pnand %p140, %p141
      %p143 = pneg %p142
      // Predicated region
      $region9: #{tpu_custom_call.1} parent=5 // pred_check
        _
      $region10: #{tpu_custom_call.1} parent=5 // pred_check_branch
        %145 = sbr.rel (%p142) target = $region12
      $region11: #{tpu_custom_call.1} parent=5 // pred_region
        %s146 = ssub.s32 %s17, 1
        // Predicated region
        $region13: #{tpu_custom_call.1} parent=11 // pred_check
          %p147 = pneg %p64
        $region14: #{tpu_custom_call.1} parent=11 // pred_check_branch
          %149 = sbr.rel (%p147) target = $region16
        $region15: #{tpu_custom_call.1} parent=11 // pred_region
          %s151 = ssub.s32 256, 256
          %152 = vsyncadd [#allocation6], %s151
          %s153 = sshll.u32 [#allocation5], 4
          %s154 = int_to_ptr.vmem [resolvable:$true] %s153
          %159 = dma.hbm_to_vmem [thread:$0]  %s1, 256, %s154, [#allocation6], 128, 128, 8
        $region16: #{tpu_custom_call.1} parent=11 // pred_fallthru
          _
        // Predicated region
        $region17: #{tpu_custom_call.1} parent=11 // pred_check
          %p160 = pneg %p85
        $region18: #{tpu_custom_call.1} parent=11 // pred_check_branch
          %162 = sbr.rel (%p160) target = $region20
        $region19: #{tpu_custom_call.1} parent=11 // pred_region
          _
        $region20: #{tpu_custom_call.1} parent=11 // pred_fallthru
          _
        // Predicated region
        $region21: #{tpu_custom_call.1} parent=11 // pred_check
          %p163 = pneg %p106
        $region22: #{tpu_custom_call.1} parent=11 // pred_check_branch
          %165 = sbr.rel (%p163) target = $region24
        $region23: #{tpu_custom_call.1} parent=11 // pred_region
          _
        $region24: #{tpu_custom_call.1} parent=11 // pred_fallthru
          _
      $region12: #{tpu_custom_call.1} parent=5 // pred_fallthru
        _
      %p166 = scmp.lt.s32.totalorder %s17, 2
      // Predicated region
      $region25: #{tpu_custom_call.1} parent=5 // pred_check
        %p167 = pneg %p166
      $region26: #{tpu_custom_call.1} parent=5 // pred_check_branch
        %169 = sbr.rel (%p167) target = $region28
      $region27: #{tpu_custom_call.1} parent=5 // pred_region
        // Predicated region
        $region29: #{tpu_custom_call.1} parent=27 // pred_check
          %p170 = pneg %p37
        $region30: #{tpu_custom_call.1} parent=27 // pred_check_branch
          %172 = sbr.rel (%p170) target = $region32
        $region31: #{tpu_custom_call.1} parent=27 // pred_region
          %s173 = sand.u32 %s27, 1
          %s174 = scalar_lea.sflag [#allocation3], %s173
          %s175 = sand.u32 %s27, 1
          %s176 = smul.addr %s175, 16
          %s177 = scalar_lea.vmem [#allocation2], %s176
          %s179 = ssub.s32 256, 256
          %180 = vsyncadd %s174, %s179
          %s181 = smul.addr %s17, 2
          %s182 = smul.addr %s181, 128
          %s183 = scalar_lea.hbm %s0, %s182
          %s184 = sshll.u32 %s177, 4
          %s185 = int_to_ptr.vmem [resolvable:$true] %s184
          %190 = dma.hbm_to_vmem [thread:$0]  %s183, 256, %s185, %s174, 128, 128, 8
        $region32: #{tpu_custom_call.1} parent=27 // pred_fallthru
          _
      $region28: #{tpu_custom_call.1} parent=5 // pred_fallthru
        _
      %p191 = scmp.le.s32.totalorder 1, %s17
      %p192 = scmp.lt.s32.totalorder %s17, 3
      %p193 = pnand %p191, %p192
      %p194 = pneg %p193
      // Predicated region
      $region33: #{tpu_custom_call.1} parent=5 // pred_check
        _
      $region34: #{tpu_custom_call.1} parent=5 // pred_check_branch
        %196 = sbr.rel (%p193) target = $region36
      $region35: #{tpu_custom_call.1} parent=5 // pred_region
        %s197 = ssub.s32 %s17, 1
        %s198 = sand.u32 %s30, 1
        %s199 = scalar_lea.sflag [#allocation3], %s198
        %s200 = sand.u32 %s30, 1
        %s201 = smul.addr %s200, 16
        %s202 = scalar_lea.vmem [#allocation2], %s201
        // Predicated region
        $region37: #{tpu_custom_call.1} parent=35 // pred_check
          %p203 = pneg %p43
        $region38: #{tpu_custom_call.1} parent=35 // pred_check_branch
          %205 = sbr.rel (%p203) target = $region40
        $region39: #{tpu_custom_call.1} parent=35 // pred_region
          %206 = dma.done %s199, 256
        $region40: #{tpu_custom_call.1} parent=35 // pred_fallthru
          _
        // Predicated region
        $region41: #{tpu_custom_call.1} parent=35 // pred_check
          %p207 = pneg %p64
        $region42: #{tpu_custom_call.1} parent=35 // pred_check_branch
          %209 = sbr.rel (%p207) target = $region44
        $region43: #{tpu_custom_call.1} parent=35 // pred_region
          %210 = dma.done [#allocation6], 256
        $region44: #{tpu_custom_call.1} parent=35 // pred_fallthru
          _
        %s211 = sand.u32 %s30, 1
        %s212 = scalar_lea.sflag [#allocation3], %s211
        %s213 = sand.u32 %s30, 1
        %s214 = smul.addr %s213, 16
        %s215 = scalar_lea.vmem [#allocation2], %s214
        %p216 = pneg %p43
        %p217 = pneg %p40
        %p218 = pneg %p64
        %p219 = pneg %p61
        %p220 = pneg %p85
        %p221 = pneg %p82
        %p222 = pneg %p106
        %p223 = pneg %p103
        %p224 = pneg %p132
        %p225 = pneg %p129
        %s226 = sand.u32 %s119, 1
        %s227 = scalar_lea.sflag [#allocation4], %s226
        %s228 = sand.u32 %s119, 1
        %s229 = smul.addr %s228, 16
        %s230 = scalar_lea.vmem [#allocation7], %s229
        %v231 = vld [vmem:[%s202] sm:$0xff]
        %v232 = vld [vmem:[%s202 + $0x8] sm:$0xff]
        %vm233 = vcmask 261120
        %v234 = vsel %vm233, %v231, 0.0
        %235 = vadd.xlane.f32.xlu0 %v234
        %v236 = vpop.xlane.xlu0 %235
        %v237 = vsel %vm233, %v232, 0.0
        %238 = vadd.xlane.f32.xlu0 %v237
        %v239 = vpop.xlane.xlu0 %238
        %v240 = vmul.f32 %v236, 0.03125
        %v241 = vmul.f32 %v239, 0.03125
        %v242 = vld [vmem:[#allocation5] sm:$0xff]
        %v243 = vld [vmem:[#allocation5 + $0x8] sm:$0xff]
        %v244 = vld [vmem:[%s2] sm:$0x1]
        %v247 = vlaneseq
        %v248 = vand.u32 %v247, 127
        %v249 = vlaneseq
        %v250 = vshrl.u32 %v249, 7
        %v251 = vsub.s32 %v248, %v250
        %v252 = vrot.slane %v240, %v251
        %v253 = vadd.s32 %v248, 4294967288
        %v254 = vlaneseq
        %v255 = vshrl.u32 %v254, 7
        %v256 = vsub.s32 %v253, %v255
        %v257 = vrot.slane %v241, %v256
        %vm258 = vcmask 130112
        %v259 = vsel %vm258, %v257, %v252
        %vm260 = vcmask 130048
        %v261 = vsel %vm260, %v259, 0
        %263 = vmatprep.subr.mxu0 0.0
        %264 = vmatpush1.msra.mxu0 %v242
        %265 = vmatprep.subr.mxu0 0.0
        %266 = vmatpush1.msra.mxu0 %v243
        %267 = vmatprep.subr.mxu0 0.0
        %268 = vmatpush1.msra.mxu0 0.0
        %269 = vmatprep.subr.mxu0 0.0
        %270 = vmatpush1.msra.mxu0 0.0
        %271 = vmatprep.subr.mxu0 0.0
        %272 = vmatpush1.msra.mxu0 0.0
        %273 = vmatprep.subr.mxu0 0.0
        %274 = vmatpush1.msra.mxu0 0.0
        %275 = vmatprep.subr.mxu0 0.0
        %276 = vmatpush1.msra.mxu0 0.0
        %277 = vmatprep.subr.mxu0 0.0
        %278 = vmatpush1.msra.mxu0 0.0
        %279 = vmatprep.subr.mxu0 0.0
        %280 = vmatpush1.msra.mxu0 0.0
        %281 = vmatprep.subr.mxu0 0.0
        %282 = vmatpush1.msra.mxu0 0.0
        %283 = vmatprep.subr.mxu0 0.0
        %284 = vmatpush1.msra.mxu0 0.0
        %285 = vmatprep.subr.mxu0 0.0
        %286 = vmatpush1.msra.mxu0 0.0
        %287 = vmatprep.subr.mxu0 0.0
        %288 = vmatpush1.msra.mxu0 0.0
        %289 = vmatprep.subr.mxu0 0.0
        %290 = vmatpush1.msra.mxu0 0.0
        %291 = vmatprep.subr.mxu0 0.0
        %292 = vmatpush1.msra.mxu0 0.0
        %293 = vmatprep.subr.mxu0 0.0
        %294 = vmatpush1.msra.mxu0 0.0
        %295 = vmatprep.subr.mxu0 0.0
        %296 = vmatpush1.msra.mxu0 0.0
        %297 = vmatprep.subr.mxu0 0.0
        %298 = vmatpush1.msra.mxu0 0.0
        %299 = vmatprep.subr.mxu0 0.0
        %300 = vmatpush1.msra.mxu0 0.0
        %301 = vmatprep.subr.mxu0 0.0
        %302 = vmatpush1.msra.mxu0 0.0
        %303 = vmatprep.subr.mxu0 0.0
        %304 = vmatpush1.msra.mxu0 0.0
        %305 = vmatprep.subr.mxu0 0.0
        %306 = vmatpush1.msra.mxu0 0.0
        %307 = vmatprep.subr.mxu0 0.0
        %308 = vmatpush1.msra.mxu0 0.0
        %309 = vmatprep.subr.mxu0 0.0
        %310 = vmatpush1.msra.mxu0 0.0
        %311 = vmatprep.subr.mxu0 0.0
        %312 = vmatpush1.msra.mxu0 0.0
        %313 = vmatprep.subr.mxu0 0.0
        %314 = vmatpush1.msra.mxu0 0.0
        %315 = vmatprep.subr.mxu0 0.0
        %316 = vmatpush1.msra.mxu0 0.0
        %317 = vmatprep.subr.mxu0 0.0
        %318 = vmatpush1.msra.mxu0 0.0
        %319 = vmatprep.subr.mxu0 0.0
        %320 = vmatpush1.msra.mxu0 0.0
        %321 = vmatprep.subr.mxu0 0.0
        %322 = vmatpush1.msra.mxu0 0.0
        %323 = vmatprep.subr.mxu0 0.0
        %324 = vmatpush1.msra.mxu0 0.0
        %325 = vmatprep.subr.mxu0 0.0
        %326 = vmatpush1.msra.mxu0 0.0
        %327 = vmatprep.mubr.f32.mxu0 0.0
        %328 = vmatmul.mubr.f32.gmra.mrb[0].mxu0 %v261
        %v329 = vpop.f32.mrb[0].mxu0
        %v330 = vadd.f32 %v244, %v329
        %v331 = vpop.f32.mrb[0].mxu0
        %332 = vdwg.mxu0
        %v333 = vxor.u32 %v330, 2147483648
        %v334 = vmul.f32 %v333, 1.442695
        %v335 = vpow.pop %v334
        %v336 = vadd.f32 %v335, 1.0
        %v337 = vrcp.pop %v336
        %v338 = vmul.f32 1.0, %v337
        %v339 = vld [vmem:[%s3] sm:$0x1]
        %v340 = vlaneseq
        %v341 = vshrl.u32 %v340, 7
        %v342 = vsub.s32 0, %v341
        %v343 = vrot.slane %v339, %v342
        %345 = vbcast.lane.b32.xlu0 %v343, 256
        %v346 = vpop.permute.xlu0 %345
        %s348 = sor.u32 256, 8
        %349 = vbcast.lane.b32.xlu0 %v343, %s348
        %v350 = vpop.permute.xlu0 %349
        %v351 = vadd.f32 %v231, %v346
        %v352 = vadd.f32 %v232, %v350
        %v353 = vlaneseq
        %v354 = vshrl.u32 %v353, 7
        %v355 = vsub.s32 0, %v354
        %v356 = vrot.slane %v338, %v355
        %358 = vbcast.lane.b32.xlu0 %v356, 256
        %v359 = vpop.permute.xlu0 %358
        %s361 = sor.u32 256, 8
        %362 = vbcast.lane.b32.xlu0 %v356, %s361
        %v363 = vpop.permute.xlu0 %362
        %v364 = vmul.f32 %v351, %v359
        %v365 = vmul.f32 %v352, %v363
        %366 = vst.msk [vmem:[%s230] sm:$0xff] %vm233, %v364
        %367 = vst.msk [vmem:[%s230 + $0x8] sm:$0xff] %vm233, %v365
        %s368 = sand.u32 %s119, 1
        %s369 = scalar_lea.sflag [#allocation4], %s368
        %s370 = sand.u32 %s119, 1
        %s371 = smul.addr %s370, 16
        %s372 = scalar_lea.vmem [#allocation7], %s371
        // Predicated region
        $region45: #{tpu_custom_call.1} parent=35 // pred_check
          %p373 = pneg %p129
        $region46: #{tpu_custom_call.1} parent=35 // pred_check_branch
          %375 = sbr.rel (%p373) target = $region48
        $region47: #{tpu_custom_call.1} parent=35 // pred_region
          %s377 = ssub.s32 256, 256
          %378 = vsyncadd %s369, %s377
          %s379 = smul.addr %s22, 2
          %s380 = smul.addr %s379, 128
          %s381 = scalar_lea.hbm %s4, %s380
          %s382 = sshll.u32 %s372, 4
          %s383 = int_to_ptr.vmem [resolvable:$true] %s382
          %388 = dma.vmem_to_hbm [thread:$0]  %s383, 256, %s381, %s369, 128, 128, 8
        $region48: #{tpu_custom_call.1} parent=35 // pred_fallthru
          _
      $region36: #{tpu_custom_call.1} parent=5 // pred_fallthru
        _
      %p389 = scmp.le.s32.totalorder 2, %s17
      // Predicated region
      $region49: #{tpu_custom_call.1} parent=5 // pred_check
        %p390 = pneg %p389
      $region50: #{tpu_custom_call.1} parent=5 // pred_check_branch
        %392 = sbr.rel (%p390) target = $region52
      $region51: #{tpu_custom_call.1} parent=5 // pred_region
        %s393 = ssub.s32 %s17, 2
        // Predicated region
        $region53: #{tpu_custom_call.1} parent=51 // pred_check
          %p394 = pneg %p135
        $region54: #{tpu_custom_call.1} parent=51 // pred_check_branch
          %396 = sbr.rel (%p394) target = $region56
        $region55: #{tpu_custom_call.1} parent=51 // pred_region
          %s397 = sand.u32 %s120, 1
          %s398 = scalar_lea.sflag [#allocation4], %s397
          %s399 = sand.u32 %s120, 1
          %s400 = smul.addr %s399, 16
          %s401 = scalar_lea.vmem [#allocation7], %s400
          %402 = dma.done %s398, 256
        $region56: #{tpu_custom_call.1} parent=51 // pred_fallthru
          _
      $region52: #{tpu_custom_call.1} parent=5 // pred_fallthru
        _
    $region6: #{tpu_custom_call.1} parent=1 // loop_footer
      %s21 = sadd.s32 1, %s17
    $region7: #{tpu_custom_call.1} parent=1 // loop_footer_branch
      %16 = sbr.rel target = $region3
    $region8: #{tpu_custom_call.1} parent=1 // loop_exit
      _
    %403 = vsyncpa [#allocation3], 1
    %s404 = scalar_lea.sflag [#allocation3], 1
    %405 = vsyncpa %s404, 1
    %406 = vsyncpa [#allocation6], 1
    %407 = vsyncpa [#allocation4], 1
    %s408 = scalar_lea.sflag [#allocation4], 1
    %409 = vsyncpa %s408, 1

</llo_original>
